<compile_context>
chip_gen: v5e
topology: v5e:2x2
jax: 0.10.0
libtpu: 0.0.40
codegen_flags: <defaults>
</compile_context>

<pallas_src>
import functools

import numpy as np

import jax
import jax.numpy as jnp
from jax.experimental import pallas as pl
from jax.experimental.pallas import tpu as pltpu


def _mgc_kernel(adj_ref, x_ref, invd_ref, w_ref, b2_ref, wlin_ref, blin_ref,
                out_ref, s_ref, cat_ref, *, mem_dim, head_dim, layers, heads,
                compute_dtype):
    """One batch block of MultiGraphConvLayer (all heads, all layers).

    adj_ref : (heads, bb, L, L)                 per-head adjacency
    x_ref   : (bb, L, mem_dim)                  gcn_inputs
    invd_ref: (heads, bb, L, 1)                 1 / (adj.sum(-1) + 1), host-precomputed
    w_ref   : (heads, layers, total, head_dim)  zero-padded, pre-transposed GCN W
    b2_ref  : (heads, layers, 1, head_dim)      2 * GCN bias (Linear applied twice)
    wlin_ref: (heads*mem_dim, mem_dim)          final Linear W^T
    blin_ref: (1, mem_dim)                      final Linear bias
    out_ref : (bb, L, mem_dim)
    s_ref   : (bb*L, total)          cache + adj@cache column blocks (per head)
    cat_ref : (bb*L, heads*mem_dim)  concatenated per-head gcn outputs
    """
    bb, L, _ = x_ref.shape
    M = bb * L
    cd = compute_dtype

    x3 = x_ref[...]                                        # (bb, L, mem_dim) f32
    x = x3.reshape(M, mem_dim)                             # (M, mem_dim) f32
    x3c = x3.astype(cd)

    for h in range(heads):
        adj = adj_ref[h].astype(cd)                        # (bb, L, L)
        inv_denom = invd_ref[h].reshape(M, 1)              # (M, 1) f32

        # Cache column block 0:  x + adj@x  (batched over bb, one slab write).
        ax = jnp.einsum('bij,bjd->bid', adj, x3c,
                        preferred_element_type=jnp.float32).reshape(M, mem_dim)
        s_ref[:, :mem_dim] = (x + ax).astype(s_ref.dtype)

        g_list = []
        for l in range(layers):                            # unrolled -> static K
            K = mem_dim + l * head_dim
            w_l = w_ref[h, l][:K, :].astype(cd)            # (K, head_dim)
            # Only columns [0:K) of s_ref are read -> never touches
            # uninitialized scratch, and no dead-K matmul work.
            axw = jnp.dot(s_ref[:, :K].astype(cd), w_l,
                          preferred_element_type=jnp.float32) + b2_ref[h, l]
            g = jnp.maximum(axw * inv_denom, 0.0)          # (M, head_dim) f32
            g_list.append(g)
            if l + 1 < layers:                             # last adj@g is unused
                g3 = g.astype(cd).reshape(bb, L, head_dim)
                ag = jnp.einsum('bij,bjd->bid', adj, g3,
                                preferred_element_type=jnp.float32)
                s_ref[:, K:K + head_dim] = (
                    g + ag.reshape(M, head_dim)).astype(s_ref.dtype)
            # TODO(synk): nn.Dropout(gcn_dropout) is identity in eval mode.

        # One full-width write per head (instead of per-layer narrow stores).
        gcn_out = jnp.concatenate(g_list, axis=-1) + x     # (M, mem_dim) f32
        cat_ref[:, h * mem_dim:(h + 1) * mem_dim] = gcn_out.astype(cat_ref.dtype)

    # Final Linear over cat(heads): single K-wide MXU matmul + bias, one write.
    out = jnp.dot(cat_ref[...].astype(cd), wlin_ref[...].astype(cd),
                  preferred_element_type=jnp.float32) + blin_ref[...]
    out_ref[...] = out.reshape(bb, L, mem_dim)


def multi_graph_conv_layer(adj, x, w_stack, b2_stack, wlin_r, blin_2d, *,
                           mem_dim, head_dim, layers, batch_block=1,
                           compute_dtype=jnp.float32, adj_dtype=None):
    heads, B, L, _ = adj.shape
    total = mem_dim + head_dim * (layers - 1)
    assert head_dim * layers == mem_dim, "module requires head_dim*layers==mem_dim"
    assert w_stack.shape == (heads, layers, total, head_dim)
    assert B % batch_block == 0, "batch must divide evenly into batch blocks"
    bb = batch_block
    nb = B // bb
    M = bb * L

    # Optional bf16 adjacency shipping (exact for 0/1 graphs); keeps HBM traffic
    # and the double-buffered adj VMEM footprint low at production shapes.
    if adj_dtype is not None:
        adj = adj.astype(adj_dtype)

    # Host-precomputed 1/denom (exact f32): removes the per-head row-sum and
    # reciprocal from the kernel.
    inv_denom = 1.0 / (jnp.sum(adj.astype(jnp.float32), axis=3, keepdims=True)
                       + 1.0)

    kernel = functools.partial(_mgc_kernel, mem_dim=mem_dim, head_dim=head_dim,
                               layers=layers, heads=heads,
                               compute_dtype=compute_dtype)

    # ---- Cost estimate (per review): helps XLA schedule around the call. ----
    flops_b = 2 * L * L * mem_dim                              # adj @ x
    for l in range(layers):
        flops_b += 2 * L * (mem_dim + l * head_dim) * head_dim  # cache @ W
    flops_b += (layers - 1) * 2 * L * L * head_dim               # adj @ g
    flops_b *= heads
    flops_b += 2 * L * (heads * mem_dim) * mem_dim               # final Linear
    flops = int(B * flops_b)
    bytes_accessed = int(
        adj.size * adj.dtype.itemsize + x.size * x.dtype.itemsize
        + inv_denom.size * 4 + w_stack.size * 4 + b2_stack.size * 4
        + wlin_r.size * 4 + blin_2d.size * 4 + B * L * mem_dim * 4)

    # ---- Explicit VMEM budget: 2x (grid-varying blocks) + params + scratch. ----
    cd_bytes = np.dtype(compute_dtype).itemsize
    blk_bytes = (
        2 * (heads * bb * L * L * adj.dtype.itemsize            # adj block
             + bb * L * mem_dim * 4                             # x block
             + heads * bb * L * 4                               # inv_denom block
             + bb * L * mem_dim * 4)                            # out block
        + 2 * (w_stack.size + b2_stack.size + wlin_r.size + blin_2d.size) * 4
        + M * total * cd_bytes + M * heads * mem_dim * cd_bytes)  # scratch
    vmem_limit = int(min(max(2 * blk_bytes + (8 << 20), 16 << 20), 64 << 20))

    return pl.pallas_call(
        kernel,
        out_shape=jax.ShapeDtypeStruct((B, L, mem_dim), jnp.float32),
        grid_spec=pltpu.PrefetchScalarGridSpec(
            num_scalar_prefetch=0,
            grid=(nb,),
            in_specs=[
                pl.BlockSpec((heads, bb, L, L), lambda b: (0, b, 0, 0)),
                pl.BlockSpec((bb, L, mem_dim), lambda b: (b, 0, 0)),
                pl.BlockSpec((heads, bb, L, 1), lambda b: (0, b, 0, 0)),
                # Parameters: constant index_map -> DMA'd once, VMEM-resident.
                pl.BlockSpec((heads, layers, total, head_dim),
                             lambda b: (0, 0, 0, 0)),
                pl.BlockSpec((heads, layers, 1, head_dim),
                             lambda b: (0, 0, 0, 0)),
                pl.BlockSpec((heads * mem_dim, mem_dim), lambda b: (0, 0)),
                pl.BlockSpec((1, mem_dim), lambda b: (0, 0)),
            ],
            out_specs=pl.BlockSpec((bb, L, mem_dim), lambda b: (b, 0, 0)),
            scratch_shapes=[
                pltpu.VMEM((M, total), compute_dtype),          # cache + adj@cache
                pltpu.VMEM((M, heads * mem_dim), compute_dtype),  # cat(head outs)
            ],
        ),
        compiler_params=pltpu.CompilerParams(
            dimension_semantics=("parallel",),
            vmem_limit_bytes=vmem_limit),
        cost_estimate=pl.CostEstimate(flops=flops, transcendentals=0,
                                      bytes_accessed=bytes_accessed),
    )(adj, x, inv_denom, w_stack, b2_stack, wlin_r, blin_2d)


def reference(adj, x, w_torch, b_torch, wlin, blin, *, heads, layers):
    """Pure-JAX transcription of the PyTorch forward (eval mode)."""
    outs = []
    for i in range(heads):
        a = adj[i]                                            # [B, L, L]
        denom = a.sum(axis=2, keepdims=True) + 1.0
        outputs = x
        cache = [x]
        out_list = []
        for l in range(layers):
            idx = i * layers + l
            W, b = w_torch[idx], b_torch[idx]
            Ax = jnp.einsum('bij,bjd->bid', a, outputs)
            AxW = Ax @ W.T + b + outputs @ W.T + b
            AxW = AxW / denom
            g = jax.nn.relu(AxW)
            cache.append(g)
            outputs = jnp.concatenate(cache, axis=2)
            out_list.append(g)
        go = jnp.concatenate(out_list, axis=2) + x
        outs.append(go)
    final = jnp.concatenate(outs, axis=2)
    return final @ wlin.T + blin


if __name__ == "__main__":
    # Small shapes consistent with the module.
    heads, layers = 2, 2
    mem_dim = 32
    head_dim = mem_dim // layers           # 16
    B, L = 2, 8
    total = mem_dim + head_dim * (layers - 1)   # 48 (last layer's g never fed back)

    key = jax.random.PRNGKey(0)
    n_keys = heads * layers * 2 + 4
    keys = jax.random.split(key, n_keys)

    # Deterministic synthetic parameters (PyTorch convention: weight is (out, in)).
    w_torch, b_torch = [], []
    ki = 0
    for i in range(heads):
        for l in range(layers):
            in_dim = mem_dim + head_dim * l
            w_torch.append(0.1 * jax.random.normal(keys[ki], (head_dim, in_dim),
                                                   jnp.float32)); ki += 1
            b_torch.append(0.1 * jax.random.normal(keys[ki], (head_dim,),
                                                   jnp.float32)); ki += 1
    wlin = 0.1 * jax.random.normal(keys[ki], (mem_dim, mem_dim * heads),
                                   jnp.float32); ki += 1
    blin = 0.1 * jax.random.normal(keys[ki], (mem_dim,), jnp.float32); ki += 1

    # Inputs.
    x = jax.random.normal(keys[ki], (B, L, mem_dim), jnp.float32); ki += 1
    adj = jax.random.bernoulli(keys[ki], 0.3,
                               (heads, B, L, L)).astype(jnp.float32)

    # Pack parameters for the kernel: transpose + zero-pad GCN weights into a
    # uniform (total, head_dim) stack (only the first mem_dim + l*head_dim rows
    # of layer l are ever read), pre-double the biases (the Linear is applied
    # twice), and pre-transpose the final Linear's weight.
    w_stack = jnp.zeros((heads, layers, total, head_dim), jnp.float32)
    b2_stack = jnp.zeros((heads, layers, 1, head_dim), jnp.float32)
    for i in range(heads):
        for l in range(layers):
            wt = w_torch[i * layers + l].T          # (in_dim, head_dim)
            w_stack = w_stack.at[i, l, :wt.shape[0], :].set(wt)
            b2_stack = b2_stack.at[i, l, 0, :].set(2.0 * b_torch[i * layers + l])
    wlin_r = wlin.T                                 # (heads*mem_dim, mem_dim)
    blin_2d = blin[None, :]

    out = multi_graph_conv_layer(adj, x, w_stack, b2_stack, wlin_r, blin_2d,
                                 mem_dim=mem_dim, head_dim=head_dim,
                                 layers=layers, batch_block=1,
                                 compute_dtype=jnp.float32)
    out = jax.block_until_ready(out)

    ref = reference(adj, x, w_torch, b_torch, wlin, blin,
                    heads=heads, layers=layers)
    assert out.shape == (B, L, mem_dim)
    assert jnp.allclose(out, ref, atol=1e-4, rtol=1e-4), "mismatch vs reference"

    print("KERNEL_OK")
</pallas_src>

<mosaic_0001>
module attributes {stable_mosaic.version = 11 : i64} {
  func.func @_mgc_kernel(%arg0: i32, %arg1: memref<2x1x8x8xf32, #tpu.memory_space<vmem>>, %arg2: memref<1x8x32xf32, #tpu.memory_space<vmem>>, %arg3: memref<2x1x8x1xf32, #tpu.memory_space<vmem>>, %arg4: memref<2x2x48x16xf32, #tpu.memory_space<vmem>>, %arg5: memref<2x2x1x16xf32, #tpu.memory_space<vmem>>, %arg6: memref<64x32xf32, #tpu.memory_space<vmem>>, %arg7: memref<1x32xf32, #tpu.memory_space<vmem>>, %arg8: memref<1x8x32xf32, #tpu.memory_space<vmem>>, %arg9: memref<8x48xf32, #tpu.memory_space<vmem>>, %arg10: memref<8x64xf32, #tpu.memory_space<vmem>>) attributes {dimension_semantics = [#tpu.dimension_semantics<parallel>], iteration_bounds = array<i64: 2>, scalar_prefetch = 0 : i64, scratch_operands = 2 : i64, tpu.core_type = #tpu.core_type<tc>, window_params = [{transform_indices = @transform_0, window_bounds = array<i64: 2, 1, 8, 8>}, {transform_indices = @transform_1, window_bounds = array<i64: 1, 8, 32>}, {transform_indices = @transform_2, window_bounds = array<i64: 2, 1, 8, 1>}, {pipeline_mode = #tpu.pipeline_mode<synchronous>, transform_indices = @transform_3, window_bounds = array<i64: 2, 2, 48, 16>}, {pipeline_mode = #tpu.pipeline_mode<synchronous>, transform_indices = @transform_4, window_bounds = array<i64: 2, 2, 1, 16>}, {pipeline_mode = #tpu.pipeline_mode<synchronous>, transform_indices = @transform_5, window_bounds = array<i64: 64, 32>}, {pipeline_mode = #tpu.pipeline_mode<synchronous>, transform_indices = @transform_6, window_bounds = array<i64: 1, 32>}, {transform_indices = @transform_7, window_bounds = array<i64: 1, 8, 32>}]} {
    %c0 = arith.constant 0 : index
    %c0_0 = arith.constant 0 : index
    %c0_1 = arith.constant 0 : index
    %0 = vector.load %arg2[%c0, %c0_0, %c0_1] : memref<1x8x32xf32, #tpu.memory_space<vmem>>, vector<1x8x32xf32>
    %1 = vector.shape_cast %0 : vector<1x8x32xf32> to vector<8x32xf32>
    %c0_2 = arith.constant 0 : index
    %c0_3 = arith.constant 0 : index
    %c0_4 = arith.constant 0 : index
    %c0_5 = arith.constant 0 : index
    %2 = vector.load %arg1[%c0_2, %c0_3, %c0_4, %c0_5] : memref<2x1x8x8xf32, #tpu.memory_space<vmem>>, vector<1x1x8x8xf32>
    %3 = vector.shape_cast %2 : vector<1x1x8x8xf32> to vector<1x8x8xf32>
    %c0_6 = arith.constant 0 : index
    %c0_7 = arith.constant 0 : index
    %c0_8 = arith.constant 0 : index
    %c0_9 = arith.constant 0 : index
    %4 = vector.load %arg3[%c0_6, %c0_7, %c0_8, %c0_9] : memref<2x1x8x1xf32, #tpu.memory_space<vmem>>, vector<1x1x8x1xf32>
    %5 = vector.shape_cast %4 : vector<1x1x8x1xf32> to vector<1x8x1xf32>
    %6 = vector.shape_cast %5 : vector<1x8x1xf32> to vector<8x1xf32>
    "tpu.trace_start"() <{level = 10 : i32, message = "bij,bjd->bid"}> : () -> ()
    %cst = arith.constant dense<0.000000e+00> : vector<1x8x32xf32>
    %7 = tpu.matmul %3, %0, %cst {dimension_numbers = #tpu.dot_dimension_numbers<[2], [1], [1], [2], [0, 0, 0, 1, 1, 2], [0], [0]>} : vector<1x8x8xf32>, vector<1x8x32xf32>, vector<1x8x32xf32> -> vector<1x8x32xf32>
    "tpu.trace_stop"() : () -> ()
    %8 = vector.shape_cast %7 : vector<1x8x32xf32> to vector<8x32xf32>
    %9 = arith.addf %1, %8 : vector<8x32xf32>
    %c0_10 = arith.constant 0 : index
    %c0_11 = arith.constant 0 : index
    %10 = vector.load %arg9[%c0_10, %c0_11] : memref<8x48xf32, #tpu.memory_space<vmem>>, vector<8x32xf32>
    tpu.vector_store %arg9[%c0_10, %c0_11], %9 {strides = array<i32>} : memref<8x48xf32, #tpu.memory_space<vmem>>, vector<8x32xf32>,
    %c0_12 = arith.constant 0 : index
    %c0_13 = arith.constant 0 : index
    %c0_14 = arith.constant 0 : index
    %c0_15 = arith.constant 0 : index
    %11 = vector.load %arg4[%c0_12, %c0_13, %c0_14, %c0_15] : memref<2x2x48x16xf32, #tpu.memory_space<vmem>>, vector<1x1x48x16xf32>
    %12 = vector.shape_cast %11 : vector<1x1x48x16xf32> to vector<48x16xf32>
    %13 = vector.extract_strided_slice %12 {offsets = [0, 0], sizes = [32, 16], strides = [1, 1]} : vector<48x16xf32> to vector<32x16xf32>
    %c0_16 = arith.constant 0 : index
    %c0_17 = arith.constant 0 : index
    %14 = vector.load %arg9[%c0_16, %c0_17] : memref<8x48xf32, #tpu.memory_space<vmem>>, vector<8x32xf32>
    %cst_18 = arith.constant dense<0.000000e+00> : vector<8x16xf32>
    %15 = tpu.matmul %14, %13, %cst_18 {dimension_numbers = #tpu.dot_dimension_numbers<[1], [0], [0], [1], [0, 0, 1, 1], [], []>} : vector<8x32xf32>, vector<32x16xf32>, vector<8x16xf32> -> vector<8x16xf32>
    %c0_19 = arith.constant 0 : index
    %c0_20 = arith.constant 0 : index
    %c0_21 = arith.constant 0 : index
    %c0_22 = arith.constant 0 : index
    %16 = vector.load %arg5[%c0_19, %c0_20, %c0_21, %c0_22] : memref<2x2x1x16xf32, #tpu.memory_space<vmem>>, vector<1x1x1x16xf32>
    %17 = vector.shape_cast %16 : vector<1x1x1x16xf32> to vector<1x16xf32>
    %18 = vector.broadcast %17 : vector<1x16xf32> to vector<8x16xf32>
    %19 = arith.addf %15, %18 : vector<8x16xf32>
    %20 = vector.broadcast %6 : vector<8x1xf32> to vector<8x16xf32>
    %21 = arith.mulf %19, %20 : vector<8x16xf32>
    %cst_23 = arith.constant 0.000000e+00 : f32
    %22 = vector.broadcast %cst_23 : f32 to vector<8x16xf32>
    %23 = arith.maximumf %21, %22 : vector<8x16xf32>
    %24 = vector.shape_cast %23 : vector<8x16xf32> to vector<1x8x16xf32>
    "tpu.trace_start"() <{level = 10 : i32, message = "bij,bjd->bid"}> : () -> ()
    %cst_24 = arith.constant dense<0.000000e+00> : vector<1x8x16xf32>
    %25 = tpu.matmul %3, %24, %cst_24 {dimension_numbers = #tpu.dot_dimension_numbers<[2], [1], [1], [2], [0, 0, 0, 1, 1, 2], [0], [0]>} : vector<1x8x8xf32>, vector<1x8x16xf32>, vector<1x8x16xf32> -> vector<1x8x16xf32>
    "tpu.trace_stop"() : () -> ()
    %26 = vector.shape_cast %25 : vector<1x8x16xf32> to vector<8x16xf32>
    %27 = arith.addf %23, %26 : vector<8x16xf32>
    %c0_25 = arith.constant 0 : index
    %c32 = arith.constant 32 : index
    %28 = vector.load %arg9[%c0_25, %c32] : memref<8x48xf32, #tpu.memory_space<vmem>>, vector<8x16xf32>
    tpu.vector_store %arg9[%c0_25, %c32], %27 {strides = array<i32>} : memref<8x48xf32, #tpu.memory_space<vmem>>, vector<8x16xf32>,
    %c0_26 = arith.constant 0 : index
    %c1 = arith.constant 1 : index
    %c0_27 = arith.constant 0 : index
    %c0_28 = arith.constant 0 : index
    %29 = vector.load %arg4[%c0_26, %c1, %c0_27, %c0_28] : memref<2x2x48x16xf32, #tpu.memory_space<vmem>>, vector<1x1x48x16xf32>
    %30 = vector.shape_cast %29 : vector<1x1x48x16xf32> to vector<48x16xf32>
    %c0_29 = arith.constant 0 : index
    %c0_30 = arith.constant 0 : index
    %31 = vector.load %arg9[%c0_29, %c0_30] : memref<8x48xf32, #tpu.memory_space<vmem>>, vector<8x48xf32>
    %cst_31 = arith.constant dense<0.000000e+00> : vector<8x16xf32>
    %32 = tpu.matmul %31, %30, %cst_31 {dimension_numbers = #tpu.dot_dimension_numbers<[1], [0], [0], [1], [0, 0, 1, 1], [], []>} : vector<8x48xf32>, vector<48x16xf32>, vector<8x16xf32> -> vector<8x16xf32>
    %c0_32 = arith.constant 0 : index
    %c1_33 = arith.constant 1 : index
    %c0_34 = arith.constant 0 : index
    %c0_35 = arith.constant 0 : index
    %33 = vector.load %arg5[%c0_32, %c1_33, %c0_34, %c0_35] : memref<2x2x1x16xf32, #tpu.memory_space<vmem>>, vector<1x1x1x16xf32>
    %34 = vector.shape_cast %33 : vector<1x1x1x16xf32> to vector<1x16xf32>
    %35 = vector.broadcast %34 : vector<1x16xf32> to vector<8x16xf32>
    %36 = arith.addf %32, %35 : vector<8x16xf32>
    %37 = vector.broadcast %6 : vector<8x1xf32> to vector<8x16xf32>
    %38 = arith.mulf %36, %37 : vector<8x16xf32>
    %cst_36 = arith.constant 0.000000e+00 : f32
    %39 = vector.broadcast %cst_36 : f32 to vector<8x16xf32>
    %40 = arith.maximumf %38, %39 : vector<8x16xf32>
    %41 = tpu.concatenate %23, %40 in 1 : vector<8x16xf32>, vector<8x16xf32> -> vector<8x32xf32>
    %42 = arith.addf %41, %1 : vector<8x32xf32>
    %c0_37 = arith.constant 0 : index
    %c0_38 = arith.constant 0 : index
    %43 = vector.load %arg10[%c0_37, %c0_38] : memref<8x64xf32, #tpu.memory_space<vmem>>, vector<8x32xf32>
    tpu.vector_store %arg10[%c0_37, %c0_38], %42 {strides = array<i32>} : memref<8x64xf32, #tpu.memory_space<vmem>>, vector<8x32xf32>,
    %c1_39 = arith.constant 1 : index
    %c0_40 = arith.constant 0 : index
    %c0_41 = arith.constant 0 : index
    %c0_42 = arith.constant 0 : index
    %44 = vector.load %arg1[%c1_39, %c0_40, %c0_41, %c0_42] : memref<2x1x8x8xf32, #tpu.memory_space<vmem>>, vector<1x1x8x8xf32>
    %45 = vector.shape_cast %44 : vector<1x1x8x8xf32> to vector<1x8x8xf32>
    %c1_43 = arith.constant 1 : index
    %c0_44 = arith.constant 0 : index
    %c0_45 = arith.constant 0 : index
    %c0_46 = arith.constant 0 : index
    %46 = vector.load %arg3[%c1_43, %c0_44, %c0_45, %c0_46] : memref<2x1x8x1xf32, #tpu.memory_space<vmem>>, vector<1x1x8x1xf32>
    %47 = vector.shape_cast %46 : vector<1x1x8x1xf32> to vector<1x8x1xf32>
    %48 = vector.shape_cast %47 : vector<1x8x1xf32> to vector<8x1xf32>
    "tpu.trace_start"() <{level = 10 : i32, message = "bij,bjd->bid"}> : () -> ()
    %cst_47 = arith.constant dense<0.000000e+00> : vector<1x8x32xf32>
    %49 = tpu.matmul %45, %0, %cst_47 {dimension_numbers = #tpu.dot_dimension_numbers<[2], [1], [1], [2], [0, 0, 0, 1, 1, 2], [0], [0]>} : vector<1x8x8xf32>, vector<1x8x32xf32>, vector<1x8x32xf32> -> vector<1x8x32xf32>
    "tpu.trace_stop"() : () -> ()
    %50 = vector.shape_cast %49 : vector<1x8x32xf32> to vector<8x32xf32>
    %51 = arith.addf %1, %50 : vector<8x32xf32>
    %c0_48 = arith.constant 0 : index
    %c0_49 = arith.constant 0 : index
    %52 = vector.load %arg9[%c0_48, %c0_49] : memref<8x48xf32, #tpu.memory_space<vmem>>, vector<8x32xf32>
    tpu.vector_store %arg9[%c0_48, %c0_49], %51 {strides = array<i32>} : memref<8x48xf32, #tpu.memory_space<vmem>>, vector<8x32xf32>,
    %c1_50 = arith.constant 1 : index
    %c0_51 = arith.constant 0 : index
    %c0_52 = arith.constant 0 : index
    %c0_53 = arith.constant 0 : index
    %53 = vector.load %arg4[%c1_50, %c0_51, %c0_52, %c0_53] : memref<2x2x48x16xf32, #tpu.memory_space<vmem>>, vector<1x1x48x16xf32>
    %54 = vector.shape_cast %53 : vector<1x1x48x16xf32> to vector<48x16xf32>
    %55 = vector.extract_strided_slice %54 {offsets = [0, 0], sizes = [32, 16], strides = [1, 1]} : vector<48x16xf32> to vector<32x16xf32>
    %c0_54 = arith.constant 0 : index
    %c0_55 = arith.constant 0 : index
    %56 = vector.load %arg9[%c0_54, %c0_55] : memref<8x48xf32, #tpu.memory_space<vmem>>, vector<8x32xf32>
    %cst_56 = arith.constant dense<0.000000e+00> : vector<8x16xf32>
    %57 = tpu.matmul %56, %55, %cst_56 {dimension_numbers = #tpu.dot_dimension_numbers<[1], [0], [0], [1], [0, 0, 1, 1], [], []>} : vector<8x32xf32>, vector<32x16xf32>, vector<8x16xf32> -> vector<8x16xf32>
    %c1_57 = arith.constant 1 : index
    %c0_58 = arith.constant 0 : index
    %c0_59 = arith.constant 0 : index
    %c0_60 = arith.constant 0 : index
    %58 = vector.load %arg5[%c1_57, %c0_58, %c0_59, %c0_60] : memref<2x2x1x16xf32, #tpu.memory_space<vmem>>, vector<1x1x1x16xf32>
    %59 = vector.shape_cast %58 : vector<1x1x1x16xf32> to vector<1x16xf32>
    %60 = vector.broadcast %59 : vector<1x16xf32> to vector<8x16xf32>
    %61 = arith.addf %57, %60 : vector<8x16xf32>
    %62 = vector.broadcast %48 : vector<8x1xf32> to vector<8x16xf32>
    %63 = arith.mulf %61, %62 : vector<8x16xf32>
    %cst_61 = arith.constant 0.000000e+00 : f32
    %64 = vector.broadcast %cst_61 : f32 to vector<8x16xf32>
    %65 = arith.maximumf %63, %64 : vector<8x16xf32>
    %66 = vector.shape_cast %65 : vector<8x16xf32> to vector<1x8x16xf32>
    "tpu.trace_start"() <{level = 10 : i32, message = "bij,bjd->bid"}> : () -> ()
    %cst_62 = arith.constant dense<0.000000e+00> : vector<1x8x16xf32>
    %67 = tpu.matmul %45, %66, %cst_62 {dimension_numbers = #tpu.dot_dimension_numbers<[2], [1], [1], [2], [0, 0, 0, 1, 1, 2], [0], [0]>} : vector<1x8x8xf32>, vector<1x8x16xf32>, vector<1x8x16xf32> -> vector<1x8x16xf32>
    "tpu.trace_stop"() : () -> ()
    %68 = vector.shape_cast %67 : vector<1x8x16xf32> to vector<8x16xf32>
    %69 = arith.addf %65, %68 : vector<8x16xf32>
    %c0_63 = arith.constant 0 : index
    %c32_64 = arith.constant 32 : index
    %70 = vector.load %arg9[%c0_63, %c32_64] : memref<8x48xf32, #tpu.memory_space<vmem>>, vector<8x16xf32>
    tpu.vector_store %arg9[%c0_63, %c32_64], %69 {strides = array<i32>} : memref<8x48xf32, #tpu.memory_space<vmem>>, vector<8x16xf32>,
    %c1_65 = arith.constant 1 : index
    %c1_66 = arith.constant 1 : index
    %c0_67 = arith.constant 0 : index
    %c0_68 = arith.constant 0 : index
    %71 = vector.load %arg4[%c1_65, %c1_66, %c0_67, %c0_68] : memref<2x2x48x16xf32, #tpu.memory_space<vmem>>, vector<1x1x48x16xf32>
    %72 = vector.shape_cast %71 : vector<1x1x48x16xf32> to vector<48x16xf32>
    %c0_69 = arith.constant 0 : index
    %c0_70 = arith.constant 0 : index
    %73 = vector.load %arg9[%c0_69, %c0_70] : memref<8x48xf32, #tpu.memory_space<vmem>>, vector<8x48xf32>
    %cst_71 = arith.constant dense<0.000000e+00> : vector<8x16xf32>
    %74 = tpu.matmul %73, %72, %cst_71 {dimension_numbers = #tpu.dot_dimension_numbers<[1], [0], [0], [1], [0, 0, 1, 1], [], []>} : vector<8x48xf32>, vector<48x16xf32>, vector<8x16xf32> -> vector<8x16xf32>
    %c1_72 = arith.constant 1 : index
    %c1_73 = arith.constant 1 : index
    %c0_74 = arith.constant 0 : index
    %c0_75 = arith.constant 0 : index
    %75 = vector.load %arg5[%c1_72, %c1_73, %c0_74, %c0_75] : memref<2x2x1x16xf32, #tpu.memory_space<vmem>>, vector<1x1x1x16xf32>
    %76 = vector.shape_cast %75 : vector<1x1x1x16xf32> to vector<1x16xf32>
    %77 = vector.broadcast %76 : vector<1x16xf32> to vector<8x16xf32>
    %78 = arith.addf %74, %77 : vector<8x16xf32>
    %79 = vector.broadcast %48 : vector<8x1xf32> to vector<8x16xf32>
    %80 = arith.mulf %78, %79 : vector<8x16xf32>
    %cst_76 = arith.constant 0.000000e+00 : f32
    %81 = vector.broadcast %cst_76 : f32 to vector<8x16xf32>
    %82 = arith.maximumf %80, %81 : vector<8x16xf32>
    %83 = tpu.concatenate %65, %82 in 1 : vector<8x16xf32>, vector<8x16xf32> -> vector<8x32xf32>
    %84 = arith.addf %83, %1 : vector<8x32xf32>
    %c0_77 = arith.constant 0 : index
    %c32_78 = arith.constant 32 : index
    %85 = vector.load %arg10[%c0_77, %c32_78] : memref<8x64xf32, #tpu.memory_space<vmem>>, vector<8x32xf32>
    tpu.vector_store %arg10[%c0_77, %c32_78], %84 {strides = array<i32>} : memref<8x64xf32, #tpu.memory_space<vmem>>, vector<8x32xf32>,
    %c0_79 = arith.constant 0 : index
    %c0_80 = arith.constant 0 : index
    %86 = vector.load %arg10[%c0_79, %c0_80] : memref<8x64xf32, #tpu.memory_space<vmem>>, vector<8x64xf32>
    %c0_81 = arith.constant 0 : index
    %c0_82 = arith.constant 0 : index
    %87 = vector.load %arg6[%c0_81, %c0_82] : memref<64x32xf32, #tpu.memory_space<vmem>>, vector<64x32xf32>
    %cst_83 = arith.constant dense<0.000000e+00> : vector<8x32xf32>
    %88 = tpu.matmul %86, %87, %cst_83 {dimension_numbers = #tpu.dot_dimension_numbers<[1], [0], [0], [1], [0, 0, 1, 1], [], []>} : vector<8x64xf32>, vector<64x32xf32>, vector<8x32xf32> -> vector<8x32xf32>
    %c0_84 = arith.constant 0 : index
    %c0_85 = arith.constant 0 : index
    %89 = vector.load %arg7[%c0_84, %c0_85] : memref<1x32xf32, #tpu.memory_space<vmem>>, vector<1x32xf32>
    %90 = vector.broadcast %89 : vector<1x32xf32> to vector<8x32xf32>
    %91 = arith.addf %88, %90 : vector<8x32xf32>
    %92 = vector.shape_cast %91 : vector<8x32xf32> to vector<1x8x32xf32>
    %c0_86 = arith.constant 0 : index
    %c0_87 = arith.constant 0 : index
    %c0_88 = arith.constant 0 : index
    %93 = vector.load %arg8[%c0_86, %c0_87, %c0_88] : memref<1x8x32xf32, #tpu.memory_space<vmem>>, vector<1x8x32xf32>
    tpu.vector_store %arg8[%c0_86, %c0_87, %c0_88], %92 {strides = array<i32>} : memref<1x8x32xf32, #tpu.memory_space<vmem>>, vector<1x8x32xf32>,
    return
  }
  func.func @transform_0(%arg0: i32) -> (i32, i32, i32, i32) {
    %c0_i32 = arith.constant 0 : i32
    %c0_i32_0 = arith.constant 0 : i32
    %c0_i32_1 = arith.constant 0 : i32
    %c0_i32_2 = arith.constant 0 : i32
    return %c0_i32, %arg0, %c0_i32_0, %c0_i32_1 : i32, i32, i32, i32
  }
  func.func @transform_1(%arg0: i32) -> (i32, i32, i32) {
    %c0_i32 = arith.constant 0 : i32
    %c0_i32_0 = arith.constant 0 : i32
    %c0_i32_1 = arith.constant 0 : i32
    return %arg0, %c0_i32, %c0_i32_0 : i32, i32, i32
  }
  func.func @transform_2(%arg0: i32) -> (i32, i32, i32, i32) {
    %c0_i32 = arith.constant 0 : i32
    %c0_i32_0 = arith.constant 0 : i32
    %c0_i32_1 = arith.constant 0 : i32
    %c0_i32_2 = arith.constant 0 : i32
    return %c0_i32, %arg0, %c0_i32_0, %c0_i32_1 : i32, i32, i32, i32
  }
  func.func @transform_3(%arg0: i32) -> (i32, i32, i32, i32) {
    %c0_i32 = arith.constant 0 : i32
    %c0_i32_0 = arith.constant 0 : i32
    %c0_i32_1 = arith.constant 0 : i32
    %c0_i32_2 = arith.constant 0 : i32
    %c0_i32_3 = arith.constant 0 : i32
    return %c0_i32, %c0_i32_0, %c0_i32_1, %c0_i32_2 : i32, i32, i32, i32
  }
  func.func @transform_4(%arg0: i32) -> (i32, i32, i32, i32) {
    %c0_i32 = arith.constant 0 : i32
    %c0_i32_0 = arith.constant 0 : i32
    %c0_i32_1 = arith.constant 0 : i32
    %c0_i32_2 = arith.constant 0 : i32
    %c0_i32_3 = arith.constant 0 : i32
    return %c0_i32, %c0_i32_0, %c0_i32_1, %c0_i32_2 : i32, i32, i32, i32
  }
  func.func @transform_5(%arg0: i32) -> (i32, i32) {
    %c0_i32 = arith.constant 0 : i32
    %c0_i32_0 = arith.constant 0 : i32
    %c0_i32_1 = arith.constant 0 : i32
    return %c0_i32, %c0_i32_0 : i32, i32
  }
  func.func @transform_6(%arg0: i32) -> (i32, i32) {
    %c0_i32 = arith.constant 0 : i32
    %c0_i32_0 = arith.constant 0 : i32
    %c0_i32_1 = arith.constant 0 : i32
    return %c0_i32, %c0_i32_0 : i32, i32
  }
  func.func @transform_7(%arg0: i32) -> (i32, i32, i32) {
    %c0_i32 = arith.constant 0 : i32
    %c0_i32_0 = arith.constant 0 : i32
    %c0_i32_1 = arith.constant 0 : i32
    return %arg0, %c0_i32, %c0_i32_0 : i32, i32, i32
  }
}

</mosaic_0001>

<llo_original>
// kernel: tpu_custom_call.1
$region0: #{tpu_custom_call.1}
  #allocation0 [shape = 'u32[]', space=smem, size = 0x4, offset = 0x4, fixed_abs, tag = 'smem constant byte address 0x4 - core index']
  #allocation1 [shape = 'u32[72,128]{1,0:T(1,128)}', space=vmem, size = 0x9000, scoped, tag = 'internal scratch']
  #allocation2 [shape = 'f32[8,48]{1,0:T(8,128)}', space=vmem, size = 0x1000, scoped, tag = 'scratch operand']
  #allocation3 [shape = 'f32[8,64]{1,0:T(8,128)}', space=vmem, size = 0x1000, scoped, tag = 'scratch operand']
  %s0 = inlined_call_operand.vmem [shape: f32[2,2,8,8], index: 0, kind: input, shape index: {}]
  %s1 = inlined_call_operand.vmem [shape: f32[2,8,32], index: 1, kind: input, shape index: {}]
  %s2 = inlined_call_operand.vmem [shape: f32[2,2,8,1], index: 2, kind: input, shape index: {}]
  %s3 = inlined_call_operand.vmem [shape: f32[2,2,48,16], index: 3, kind: input, shape index: {}]
  %s4 = inlined_call_operand.vmem [shape: f32[2,2,1,16], index: 4, kind: input, shape index: {}]
  %s5 = inlined_call_operand.vmem [shape: f32[64,32], index: 5, kind: input, shape index: {}]
  %s6 = inlined_call_operand.vmem [shape: f32[1,32], index: 6, kind: input, shape index: {}]
  %s7 = inlined_call_operand.hbm [shape: f32[2,8,32], index: 7, kind: output, shape index: {}]
  %s8 = sld [smem:[#allocation0]]
  $region137: #{tpu_custom_call.1} parent=0
    _
  %s10 = ssub.s32 1, %s8
  %s11 = scalar_select 0, %s10, %s8
  $region1: #{tpu_custom_call.1} parent=0
    #allocation4 [shape = 'u8[16384]{0}', space=vmem, size = 0x4000, scoped, tag = 'input window, operand 0']
    #allocation5 [shape = 'u8[16384]{0}', space=vmem, size = 0x4000, scoped, tag = 'input window, operand 2']
    #allocation6 [shape = 'u8[8192]{0}', space=vmem, size = 0x2000, scoped, tag = 'output window, operand 0']
    #allocation7 [shape = 's32[2]{0}', space=sflag, size = 0x8, scoped, tag = 'scoped memory for tpu_custom_call.1']
    %12 = vsyncpa [#allocation7], 0
    %s13 = scalar_lea.sflag [#allocation7], 1
    %14 = vsyncpa %s13, 0
    loop: start=0, step=1, limit=4
    $region2: #{tpu_custom_call.1} parent=1 // loop_pre_header
      _
    $region3: #{tpu_custom_call.1} parent=1 // loop_header
      %s16 = sphi 0, %s20
      %p17 = scmp.ge.s32.totalorder %s16, 4
      %s26 = sphi 0, %s28
      %s29 = sphi 0, %s26
      %s30 = sphi 0, %s29
      %s46 = sphi 0, %s30
      %s52 = sphi 0, %s54
      %s55 = sphi 0, %s52
      %s56 = sphi 0, %s55
      %s72 = sphi 0, %s56
      %s78 = sphi 0, %s80
      %s81 = sphi 0, %s78
      %s82 = sphi 0, %s81
      %s98 = sphi 0, %s82
      %s102 = sphi 0, %s102
      %s104 = sphi 0, %s102
      %s105 = sphi 0, %s104
      %s119 = sphi 0, %s105
      %s123 = sphi 0, %s123
      %s125 = sphi 0, %s123
      %s126 = sphi 0, %s125
      %s140 = sphi 0, %s126
      %s144 = sphi 0, %s144
      %s146 = sphi 0, %s144
      %s147 = sphi 0, %s146
      %s161 = sphi 0, %s147
      %s165 = sphi 0, %s165
      %s167 = sphi 0, %s165
      %s168 = sphi 0, %s167
      %s182 = sphi 0, %s168
      %s188 = sphi 0, %s190
      %s191 = sphi 0, %s188
      %s192 = sphi 0, %s191
      %s208 = sphi 0, %s192
    $region4: #{tpu_custom_call.1} parent=1 // loop_header_branch
      %19 = sbr.rel (%p17) target = $region8
    $region5: #{tpu_custom_call.1} parent=1 // loop_body
      %s21 = ssub.s32 %s16, 1
      %s22 = ssub.s32 %s16, 2
      %s23 = sadd.s32 %s16, 1
      %s24 = ssub.s32 %s16, %s23
      %p25 = scmp.eq.s32.totalorder %s24, 0
      %s27 = sadd.s32 %s26, 1
      %s28 = scalar_select %p25, %s26, %s27
      %p31 = pneg %p25
      %p32 = scmp.eq.s32.totalorder %s16, 1
      %p33 = por %p31, %p32
      %p34 = scmp.ne.s32.totalorder %s26, %s29
      %p35 = scmp.eq.s32.totalorder %s16, 0
      %p36 = por %p34, %p35
      %p37 = scmp.ne.s32.totalorder %s26, %s29
      %p38 = scmp.eq.s32.totalorder %s21, 1
      %p39 = por %p37, %p38
      %p40 = scmp.ne.s32.totalorder %s29, %s30
      %p41 = scmp.eq.s32.totalorder %s21, 0
      %p42 = por %p40, %p41
      %p43 = scmp.ne.s32.totalorder %s29, %s30
      %p44 = scmp.eq.s32.totalorder %s22, 1
      %p45 = por %p43, %p44
      %p47 = scmp.ne.s32.totalorder %s30, %s46
      %p48 = scmp.eq.s32.totalorder %s22, 0
      %p49 = por %p47, %p48
      %s50 = ssub.s32 %s16, %s23
      %p51 = scmp.eq.s32.totalorder %s50, 0
      %s53 = sadd.s32 %s52, 1
      %s54 = scalar_select %p51, %s52, %s53
      %p57 = pneg %p51
      %p58 = scmp.eq.s32.totalorder %s16, 1
      %p59 = por %p57, %p58
      %p60 = scmp.ne.s32.totalorder %s52, %s55
      %p61 = scmp.eq.s32.totalorder %s16, 0
      %p62 = por %p60, %p61
      %p63 = scmp.ne.s32.totalorder %s52, %s55
      %p64 = scmp.eq.s32.totalorder %s21, 1
      %p65 = por %p63, %p64
      %p66 = scmp.ne.s32.totalorder %s55, %s56
      %p67 = scmp.eq.s32.totalorder %s21, 0
      %p68 = por %p66, %p67
      %p69 = scmp.ne.s32.totalorder %s55, %s56
      %p70 = scmp.eq.s32.totalorder %s22, 1
      %p71 = por %p69, %p70
      %p73 = scmp.ne.s32.totalorder %s56, %s72
      %p74 = scmp.eq.s32.totalorder %s22, 0
      %p75 = por %p73, %p74
      %s76 = ssub.s32 %s16, %s23
      %p77 = scmp.eq.s32.totalorder %s76, 0
      %s79 = sadd.s32 %s78, 1
      %s80 = scalar_select %p77, %s78, %s79
      %p83 = pneg %p77
      %p84 = scmp.eq.s32.totalorder %s16, 1
      %p85 = por %p83, %p84
      %p86 = scmp.ne.s32.totalorder %s78, %s81
      %p87 = scmp.eq.s32.totalorder %s16, 0
      %p88 = por %p86, %p87
      %p89 = scmp.ne.s32.totalorder %s78, %s81
      %p90 = scmp.eq.s32.totalorder %s21, 1
      %p91 = por %p89, %p90
      %p92 = scmp.ne.s32.totalorder %s81, %s82
      %p93 = scmp.eq.s32.totalorder %s21, 0
      %p94 = por %p92, %p93
      %p95 = scmp.ne.s32.totalorder %s81, %s82
      %p96 = scmp.eq.s32.totalorder %s22, 1
      %p97 = por %p95, %p96
      %p99 = scmp.ne.s32.totalorder %s82, %s98
      %p100 = scmp.eq.s32.totalorder %s22, 0
      %p101 = por %p99, %p100
      %s103 = sadd.s32 %s102, 1
      %p106 = scmp.eq.s32.totalorder %s16, 1
      %p107 = scmp.ne.s32.totalorder %s102, %s104
      %p108 = scmp.eq.s32.totalorder %s16, 0
      %p109 = por %p107, %p108
      %p110 = scmp.ne.s32.totalorder %s102, %s104
      %p111 = scmp.eq.s32.totalorder %s21, 1
      %p112 = por %p110, %p111
      %p113 = scmp.ne.s32.totalorder %s104, %s105
      %p114 = scmp.eq.s32.totalorder %s21, 0
      %p115 = por %p113, %p114
      %p116 = scmp.ne.s32.totalorder %s104, %s105
      %p117 = scmp.eq.s32.totalorder %s22, 1
      %p118 = por %p116, %p117
      %p120 = scmp.ne.s32.totalorder %s105, %s119
      %p121 = scmp.eq.s32.totalorder %s22, 0
      %p122 = por %p120, %p121
      %s124 = sadd.s32 %s123, 1
      %p127 = scmp.eq.s32.totalorder %s16, 1
      %p128 = scmp.ne.s32.totalorder %s123, %s125
      %p129 = scmp.eq.s32.totalorder %s16, 0
      %p130 = por %p128, %p129
      %p131 = scmp.ne.s32.totalorder %s123, %s125
      %p132 = scmp.eq.s32.totalorder %s21, 1
      %p133 = por %p131, %p132
      %p134 = scmp.ne.s32.totalorder %s125, %s126
      %p135 = scmp.eq.s32.totalorder %s21, 0
      %p136 = por %p134, %p135
      %p137 = scmp.ne.s32.totalorder %s125, %s126
      %p138 = scmp.eq.s32.totalorder %s22, 1
      %p139 = por %p137, %p138
      %p141 = scmp.ne.s32.totalorder %s126, %s140
      %p142 = scmp.eq.s32.totalorder %s22, 0
      %p143 = por %p141, %p142
      %s145 = sadd.s32 %s144, 1
      %p148 = scmp.eq.s32.totalorder %s16, 1
      %p149 = scmp.ne.s32.totalorder %s144, %s146
      %p150 = scmp.eq.s32.totalorder %s16, 0
      %p151 = por %p149, %p150
      %p152 = scmp.ne.s32.totalorder %s144, %s146
      %p153 = scmp.eq.s32.totalorder %s21, 1
      %p154 = por %p152, %p153
      %p155 = scmp.ne.s32.totalorder %s146, %s147
      %p156 = scmp.eq.s32.totalorder %s21, 0
      %p157 = por %p155, %p156
      %p158 = scmp.ne.s32.totalorder %s146, %s147
      %p159 = scmp.eq.s32.totalorder %s22, 1
      %p160 = por %p158, %p159
      %p162 = scmp.ne.s32.totalorder %s147, %s161
      %p163 = scmp.eq.s32.totalorder %s22, 0
      %p164 = por %p162, %p163
      %s166 = sadd.s32 %s165, 1
      %p169 = scmp.eq.s32.totalorder %s16, 1
      %p170 = scmp.ne.s32.totalorder %s165, %s167
      %p171 = scmp.eq.s32.totalorder %s16, 0
      %p172 = por %p170, %p171
      %p173 = scmp.ne.s32.totalorder %s165, %s167
      %p174 = scmp.eq.s32.totalorder %s21, 1
      %p175 = por %p173, %p174
      %p176 = scmp.ne.s32.totalorder %s167, %s168
      %p177 = scmp.eq.s32.totalorder %s21, 0
      %p178 = por %p176, %p177
      %p179 = scmp.ne.s32.totalorder %s167, %s168
      %p180 = scmp.eq.s32.totalorder %s22, 1
      %p181 = por %p179, %p180
      %p183 = scmp.ne.s32.totalorder %s168, %s182
      %p184 = scmp.eq.s32.totalorder %s22, 0
      %p185 = por %p183, %p184
      %s186 = ssub.s32 %s16, %s23
      %p187 = scmp.eq.s32.totalorder %s186, 0
      %s189 = sadd.s32 %s188, 1
      %s190 = scalar_select %p187, %s188, %s189
      %p193 = pneg %p187
      %p194 = scmp.eq.s32.totalorder %s16, 1
      %p195 = por %p193, %p194
      %p196 = scmp.ne.s32.totalorder %s188, %s191
      %p197 = scmp.eq.s32.totalorder %s16, 0
      %p198 = por %p196, %p197
      %p199 = scmp.ne.s32.totalorder %s188, %s191
      %p200 = scmp.eq.s32.totalorder %s21, 1
      %p201 = por %p199, %p200
      %p202 = scmp.ne.s32.totalorder %s191, %s192
      %p203 = scmp.eq.s32.totalorder %s21, 0
      %p204 = por %p202, %p203
      %p205 = scmp.ne.s32.totalorder %s191, %s192
      %p206 = scmp.eq.s32.totalorder %s22, 1
      %p207 = por %p205, %p206
      %p209 = scmp.ne.s32.totalorder %s192, %s208
      %p210 = scmp.eq.s32.totalorder %s22, 0
      %p211 = por %p209, %p210
      %p212 = scmp.le.s32.totalorder 1, %s16
      %p213 = scmp.lt.s32.totalorder %s16, 3
      %p214 = pnand %p212, %p213
      %p215 = pneg %p214
      // Predicated region
      $region9: #{tpu_custom_call.1} parent=5 // pred_check
        _
      $region10: #{tpu_custom_call.1} parent=5 // pred_check_branch
        %217 = sbr.rel (%p214) target = $region12
      $region11: #{tpu_custom_call.1} parent=5 // pred_region
        %s218 = ssub.s32 %s16, 1
        // Predicated region
        $region13: #{tpu_custom_call.1} parent=11 // pred_check
          %p219 = pneg %p115
        $region14: #{tpu_custom_call.1} parent=11 // pred_check_branch
          %221 = sbr.rel (%p219) target = $region16
        $region15: #{tpu_custom_call.1} parent=11 // pred_region
          _
        $region16: #{tpu_custom_call.1} parent=11 // pred_fallthru
          _
        // Predicated region
        $region17: #{tpu_custom_call.1} parent=11 // pred_check
          %p222 = pneg %p136
        $region18: #{tpu_custom_call.1} parent=11 // pred_check_branch
          %224 = sbr.rel (%p222) target = $region20
        $region19: #{tpu_custom_call.1} parent=11 // pred_region
          _
        $region20: #{tpu_custom_call.1} parent=11 // pred_fallthru
          _
        // Predicated region
        $region21: #{tpu_custom_call.1} parent=11 // pred_check
          %p225 = pneg %p157
        $region22: #{tpu_custom_call.1} parent=11 // pred_check_branch
          %227 = sbr.rel (%p225) target = $region24
        $region23: #{tpu_custom_call.1} parent=11 // pred_region
          _
        $region24: #{tpu_custom_call.1} parent=11 // pred_fallthru
          _
        // Predicated region
        $region25: #{tpu_custom_call.1} parent=11 // pred_check
          %p228 = pneg %p178
        $region26: #{tpu_custom_call.1} parent=11 // pred_check_branch
          %230 = sbr.rel (%p228) target = $region28
        $region27: #{tpu_custom_call.1} parent=11 // pred_region
          _
        $region28: #{tpu_custom_call.1} parent=11 // pred_fallthru
          _
      $region12: #{tpu_custom_call.1} parent=5 // pred_fallthru
        _
      %p231 = scmp.lt.s32.totalorder %s16, 2
      // Predicated region
      $region29: #{tpu_custom_call.1} parent=5 // pred_check
        %p232 = pneg %p231
      $region30: #{tpu_custom_call.1} parent=5 // pred_check_branch
        %234 = sbr.rel (%p232) target = $region32
      $region31: #{tpu_custom_call.1} parent=5 // pred_region
        // Predicated region
        $region33: #{tpu_custom_call.1} parent=31 // pred_check
          %p235 = pneg %p36
        $region34: #{tpu_custom_call.1} parent=31 // pred_check_branch
          %237 = sbr.rel (%p235) target = $region36
        $region35: #{tpu_custom_call.1} parent=31 // pred_region
          %s238 = sand.u32 %s26, 1
          %s239 = sand.u32 %s26, 1
          %s240 = smul.addr %s239, 16
          %s241 = scalar_lea.vmem [#allocation4], %s240
          %s242 = smul.addr %s16, 8
          %s243 = scalar_lea.vmem %s0, %s242
          // Predicated region
          $region37: #{tpu_custom_call.1} parent=35 // pred_check
            _
          $region38: #{tpu_custom_call.1} parent=35 // pred_check_branch
            %245 = sbr.rel (0) target = $region40
          $region39: #{tpu_custom_call.1} parent=35 // pred_region
            // Predicated region
            $region41: #{tpu_custom_call.1} parent=39 // pred_check
              _
            $region42: #{tpu_custom_call.1} parent=39 // pred_check_branch
              %247 = sbr.rel (0) target = $region44
            $region43: #{tpu_custom_call.1} parent=39 // pred_region
              // Predicated region
              $region56: #{tpu_custom_call.1} parent=43 // pred_check
                _
              $region57: #{tpu_custom_call.1} parent=43 // pred_check_branch
                %265 = sbr.rel (0) target = $region59
              $region58: #{tpu_custom_call.1} parent=43 // pred_region
                loop: start=0, step=1, limit=1
                $region60: #{tpu_custom_call.1} parent=58 // loop_pre_header
                  _
                $region61: #{tpu_custom_call.1} parent=58 // loop_header
                  %s267 = sphi 0, %s271
                  %p268 = scmp.ge.s32.totalorder %s267, 1
                  %s272 = sphi %s243, %s243
                  %s273 = sphi %s241, %s241
                $region62: #{tpu_custom_call.1} parent=58 // loop_header_branch
                  %270 = sbr.rel (%p268) target = $region66
                $region63: #{tpu_custom_call.1} parent=58 // loop_body
                  %v274 = vld [vmem:[%s272] sm:$0xff]
                  %275 = vst [vmem:[%s273] sm:$0xff] %v274
                  %v276 = vld [vmem:[%s272 + $0x10] sm:$0xff]
                  %277 = vst [vmem:[%s273 + $0x8] sm:$0xff] %v276
                $region64: #{tpu_custom_call.1} parent=58 // loop_footer
                  %s271 = sadd.s32 1, %s267
                $region65: #{tpu_custom_call.1} parent=58 // loop_footer_branch
                  %266 = sbr.rel target = $region61
                $region66: #{tpu_custom_call.1} parent=58 // loop_exit
                  _
              $region59: #{tpu_custom_call.1} parent=43 // pred_fallthru
                _
              // Predicated region
              $region67: #{tpu_custom_call.1} parent=43 // pred_check
                _
              $region68: #{tpu_custom_call.1} parent=43 // pred_check_branch
                %279 = sbr.rel target = $region70
              $region69: #{tpu_custom_call.1} parent=43 // pred_region
                _
              $region70: #{tpu_custom_call.1} parent=43 // pred_fallthru
                _
            $region44: #{tpu_custom_call.1} parent=39 // pred_fallthru
              _
            // Predicated region
            $region45: #{tpu_custom_call.1} parent=39 // pred_check
              _
            $region46: #{tpu_custom_call.1} parent=39 // pred_check_branch
              %249 = sbr.rel target = $region48
            $region47: #{tpu_custom_call.1} parent=39 // pred_region
              %s251 = ssub.s32 256, 1
              loop: start=0, step=1, limit=1
              $region49: #{tpu_custom_call.1} parent=47 // loop_pre_header
                _
              $region50: #{tpu_custom_call.1} parent=47 // loop_header
                %s253 = sphi 0, %s257
                %p254 = scmp.ge.s32.totalorder %s253, 1
                %s258 = sphi %s243, %s243
                %s259 = sphi %s241, %s241
              $region51: #{tpu_custom_call.1} parent=47 // loop_header_branch
                %256 = sbr.rel (%p254) target = $region55
              $region52: #{tpu_custom_call.1} parent=47 // loop_body
                %v260 = vld [vmem:[%s258] sm:%s251]
                %261 = vst [vmem:[%s259] sm:%s251] %v260
                %v262 = vld [vmem:[%s258 + $0x10] sm:%s251]
                %263 = vst [vmem:[%s259 + $0x8] sm:%s251] %v262
              $region53: #{tpu_custom_call.1} parent=47 // loop_footer
                %s257 = sadd.s32 1, %s253
              $region54: #{tpu_custom_call.1} parent=47 // loop_footer_branch
                %252 = sbr.rel target = $region50
              $region55: #{tpu_custom_call.1} parent=47 // loop_exit
                _
            $region48: #{tpu_custom_call.1} parent=39 // pred_fallthru
              _
          $region40: #{tpu_custom_call.1} parent=35 // pred_fallthru
            _
          %280 = vnop
        $region36: #{tpu_custom_call.1} parent=31 // pred_fallthru
          _
        // Predicated region
        $region71: #{tpu_custom_call.1} parent=31 // pred_check
          %p281 = pneg %p62
        $region72: #{tpu_custom_call.1} parent=31 // pred_check_branch
          %283 = sbr.rel (%p281) target = $region74
        $region73: #{tpu_custom_call.1} parent=31 // pred_region
          %p284 = scmp.lt.s32.totalorder %s16, 1
          %s285 = scalar_select %p284, %s16, 1
          %s286 = smul.addr %s285, 8
          %s287 = scalar_lea.vmem %s1, %s286
        $region74: #{tpu_custom_call.1} parent=31 // pred_fallthru
          _
        // Predicated region
        $region75: #{tpu_custom_call.1} parent=31 // pred_check
          %p288 = pneg %p88
        $region76: #{tpu_custom_call.1} parent=31 // pred_check_branch
          %290 = sbr.rel (%p288) target = $region78
        $region77: #{tpu_custom_call.1} parent=31 // pred_region
          %s291 = sand.u32 %s78, 1
          %s292 = sand.u32 %s78, 1
          %s293 = smul.addr %s292, 16
          %s294 = scalar_lea.vmem [#allocation5], %s293
          %s295 = smul.addr %s16, 8
          %s296 = scalar_lea.vmem %s2, %s295
          // Predicated region
          $region79: #{tpu_custom_call.1} parent=77 // pred_check
            _
          $region80: #{tpu_custom_call.1} parent=77 // pred_check_branch
            %298 = sbr.rel (0) target = $region82
          $region81: #{tpu_custom_call.1} parent=77 // pred_region
            // Predicated region
            $region83: #{tpu_custom_call.1} parent=81 // pred_check
              _
            $region84: #{tpu_custom_call.1} parent=81 // pred_check_branch
              %300 = sbr.rel (0) target = $region86
            $region85: #{tpu_custom_call.1} parent=81 // pred_region
              // Predicated region
              $region98: #{tpu_custom_call.1} parent=85 // pred_check
                _
              $region99: #{tpu_custom_call.1} parent=85 // pred_check_branch
                %318 = sbr.rel (0) target = $region101
              $region100: #{tpu_custom_call.1} parent=85 // pred_region
                loop: start=0, step=1, limit=1
                $region102: #{tpu_custom_call.1} parent=100 // loop_pre_header
                  _
                $region103: #{tpu_custom_call.1} parent=100 // loop_header
                  %s320 = sphi 0, %s324
                  %p321 = scmp.ge.s32.totalorder %s320, 1
                  %s325 = sphi %s296, %s296
                  %s326 = sphi %s294, %s294
                $region104: #{tpu_custom_call.1} parent=100 // loop_header_branch
                  %323 = sbr.rel (%p321) target = $region108
                $region105: #{tpu_custom_call.1} parent=100 // loop_body
                  %v327 = vld [vmem:[%s325] sm:$0xff]
                  %328 = vst [vmem:[%s326] sm:$0xff] %v327
                  %v329 = vld [vmem:[%s325 + $0x10] sm:$0xff]
                  %330 = vst [vmem:[%s326 + $0x8] sm:$0xff] %v329
                $region106: #{tpu_custom_call.1} parent=100 // loop_footer
                  %s324 = sadd.s32 1, %s320
                $region107: #{tpu_custom_call.1} parent=100 // loop_footer_branch
                  %319 = sbr.rel target = $region103
                $region108: #{tpu_custom_call.1} parent=100 // loop_exit
                  _
              $region101: #{tpu_custom_call.1} parent=85 // pred_fallthru
                _
              // Predicated region
              $region109: #{tpu_custom_call.1} parent=85 // pred_check
                _
              $region110: #{tpu_custom_call.1} parent=85 // pred_check_branch
                %332 = sbr.rel target = $region112
              $region111: #{tpu_custom_call.1} parent=85 // pred_region
                _
              $region112: #{tpu_custom_call.1} parent=85 // pred_fallthru
                _
            $region86: #{tpu_custom_call.1} parent=81 // pred_fallthru
              _
            // Predicated region
            $region87: #{tpu_custom_call.1} parent=81 // pred_check
              _
            $region88: #{tpu_custom_call.1} parent=81 // pred_check_branch
              %302 = sbr.rel target = $region90
            $region89: #{tpu_custom_call.1} parent=81 // pred_region
              %s304 = ssub.s32 256, 1
              loop: start=0, step=1, limit=1
              $region91: #{tpu_custom_call.1} parent=89 // loop_pre_header
                _
              $region92: #{tpu_custom_call.1} parent=89 // loop_header
                %s306 = sphi 0, %s310
                %p307 = scmp.ge.s32.totalorder %s306, 1
                %s311 = sphi %s296, %s296
                %s312 = sphi %s294, %s294
              $region93: #{tpu_custom_call.1} parent=89 // loop_header_branch
                %309 = sbr.rel (%p307) target = $region97
              $region94: #{tpu_custom_call.1} parent=89 // loop_body
                %v313 = vld [vmem:[%s311] sm:%s304]
                %314 = vst [vmem:[%s312] sm:%s304] %v313
                %v315 = vld [vmem:[%s311 + $0x10] sm:%s304]
                %316 = vst [vmem:[%s312 + $0x8] sm:%s304] %v315
              $region95: #{tpu_custom_call.1} parent=89 // loop_footer
                %s310 = sadd.s32 1, %s306
              $region96: #{tpu_custom_call.1} parent=89 // loop_footer_branch
                %305 = sbr.rel target = $region92
              $region97: #{tpu_custom_call.1} parent=89 // loop_exit
                _
            $region90: #{tpu_custom_call.1} parent=81 // pred_fallthru
              _
          $region82: #{tpu_custom_call.1} parent=77 // pred_fallthru
            _
          %333 = vnop
        $region78: #{tpu_custom_call.1} parent=31 // pred_fallthru
          _
      $region32: #{tpu_custom_call.1} parent=5 // pred_fallthru
        _
      %p334 = scmp.le.s32.totalorder 1, %s16
      %p335 = scmp.lt.s32.totalorder %s16, 3
      %p336 = pnand %p334, %p335
      %p337 = pneg %p336
      // Predicated region
      $region113: #{tpu_custom_call.1} parent=5 // pred_check
        _
      $region114: #{tpu_custom_call.1} parent=5 // pred_check_branch
        %339 = sbr.rel (%p336) target = $region116
      $region115: #{tpu_custom_call.1} parent=5 // pred_region
        %s340 = ssub.s32 %s16, 1
        %s341 = sand.u32 %s29, 1
        %s342 = sand.u32 %s29, 1
        %s343 = smul.addr %s342, 16
        %s344 = scalar_lea.vmem [#allocation4], %s343
        // Predicated region
        $region117: #{tpu_custom_call.1} parent=115 // pred_check
          %p345 = pneg %p42
        $region118: #{tpu_custom_call.1} parent=115 // pred_check_branch
          %347 = sbr.rel (%p345) target = $region120
        $region119: #{tpu_custom_call.1} parent=115 // pred_region
          _
        $region120: #{tpu_custom_call.1} parent=115 // pred_fallthru
          _
        %s348 = sand.u32 %s81, 1
        %s349 = sand.u32 %s81, 1
        %s350 = smul.addr %s349, 16
        %s351 = scalar_lea.vmem [#allocation5], %s350
        // Predicated region
        $region121: #{tpu_custom_call.1} parent=115 // pred_check
          %p352 = pneg %p94
        $region122: #{tpu_custom_call.1} parent=115 // pred_check_branch
          %354 = sbr.rel (%p352) target = $region124
        $region123: #{tpu_custom_call.1} parent=115 // pred_region
          _
        $region124: #{tpu_custom_call.1} parent=115 // pred_fallthru
          _
        %s355 = sand.u32 %s29, 1
        %s356 = sand.u32 %s29, 1
        %s357 = smul.addr %s356, 16
        %s358 = scalar_lea.vmem [#allocation4], %s357
        %p359 = pneg %p42
        %p360 = pneg %p39
        %p361 = scmp.lt.s32.totalorder %s21, 1
        %s362 = scalar_select %p361, %s21, 1
        %s363 = smul.addr %s362, 8
        %s364 = scalar_lea.vmem %s1, %s363
        %p365 = pneg %p68
        %p366 = pneg %p65
        %s367 = sand.u32 %s81, 1
        %s368 = sand.u32 %s81, 1
        %s369 = smul.addr %s368, 16
        %s370 = scalar_lea.vmem [#allocation5], %s369
        %p371 = pneg %p94
        %p372 = pneg %p91
        %p373 = pneg %p115
        %p374 = pneg %p112
        %p375 = pneg %p136
        %p376 = pneg %p133
        %p377 = pneg %p157
        %p378 = pneg %p154
        %p379 = pneg %p178
        %p380 = pneg %p175
        %p381 = pneg %p204
        %p382 = pneg %p201
        %s383 = sand.u32 %s191, 1
        %s384 = scalar_lea.sflag [#allocation7], %s383
        %s385 = sand.u32 %s191, 1
        %s386 = smul.addr %s385, 8
        %s387 = scalar_lea.vmem [#allocation6], %s386
        %p388 = scmp.lt.s32.totalorder %s21, 1
        %s389 = scalar_select %p388, %s21, 1
        %s390 = smul.addr %s389, 8
        %s391 = scalar_lea.vmem %s1, %s390
        %v392 = vld [vmem:[%s391] sm:$0xff]
        %v393 = vld [vmem:[%s344] sm:$0xff]
        %v394 = vld [vmem:[%s351] sm:$0xff]
        %vm395 = vcmask 64512
        %v397 = vsel %vm395, %v393, 0
        %399 = vmatpush.msra.mxu0 0.0
        %400 = vmatpush.msra.mxu0 0.0
        %401 = vmatpush.msra.mxu0 0.0
        %402 = vmatpush.msra.mxu0 0.0
        %403 = vmatpush.msra.mxu0 0.0
        %404 = vmatpush.msra.mxu0 0.0
        %405 = vmatpush.msra.mxu0 0.0
        %406 = vmatpush.msra.mxu0 0.0
        %407 = vmatpush.msra.mxu0 0.0
        %408 = vmatpush.msra.mxu0 0.0
        %409 = vmatpush.msra.mxu0 0.0
        %410 = vmatpush.msra.mxu0 0.0
        %411 = vmatpush.msra.mxu0 0.0
        %412 = vmatpush.msra.mxu0 0.0
        %413 = vmatpush.msra.mxu0 0.0
        %414 = vmatpush.msra.mxu0 %v392
        %415 = vmatmul.f32.gmra.mxu0 %v397
        %v416 = vpop.f32.mrf.mxu0
        %v417 = vadd.f32 0.0, %v416
        %418 = vdwg.mxu0
        %v419 = vadd.f32 %v392, %v417
        %vm420 = vcmask 261120
        %421 = vst.msk [vmem:[#allocation2] sm:$0xff] %vm420, %v419
        %v422 = vld [vmem:[%s3] sm:$0xff]
        %v423 = vld [vmem:[%s3 + $0x8] sm:$0xff]
        %v424 = vld [vmem:[%s3 + $0x10] sm:$0xff]
        %v425 = vld [vmem:[%s3 + $0x18] sm:$0xff]
        %v426 = vld [vmem:[#allocation2] sm:$0xff]
        %v427 = vld [vmem:[%s4] sm:$0x1]
        %v429 = vperm.slane %v427, 0
        %v432 = vsel %vm420, %v426, 0
        %434 = vmatpush.msra.mxu0 0.0
        %435 = vmatpush.msra.mxu0 0.0
        %436 = vmatpush.msra.mxu0 0.0
        %437 = vmatpush.msra.mxu0 0.0
        %438 = vmatpush.msra.mxu0 0.0
        %439 = vmatpush.msra.mxu0 0.0
        %440 = vmatpush.msra.mxu0 0.0
        %441 = vmatpush.msra.mxu0 0.0
        %442 = vmatpush.msra.mxu0 0.0
        %443 = vmatpush.msra.mxu0 0.0
        %444 = vmatpush.msra.mxu0 0.0
        %445 = vmatpush.msra.mxu0 0.0
        %446 = vmatpush.msra.mxu0 %v425
        %447 = vmatpush.msra.mxu0 %v424
        %448 = vmatpush.msra.mxu0 %v423
        %449 = vmatpush.msra.mxu0 %v422
        %450 = vmatmul.f32.gmra.mxu0 %v432
        %v451 = vpop.f32.mrf.mxu0
        %v452 = vadd.f32 %v429, %v451
        %453 = vdwg.mxu0
        %455 = vset.pattern.permute.xlu0 0
        %456 = vperm.xlu0 %455, %v394
        %v457 = vpop.permute.xlu0 %456
        %v459 = vmul.f32 %v452, %v457
        %v460 = vmax.f32 %v459, 0.0
        %461 = vmatpush.msra.mxu0 0.0
        %462 = vmatpush.msra.mxu0 0.0
        %463 = vmatpush.msra.mxu0 0.0
        %464 = vmatpush.msra.mxu0 0.0
        %465 = vmatpush.msra.mxu0 0.0
        %466 = vmatpush.msra.mxu0 0.0
        %467 = vmatpush.msra.mxu0 0.0
        %468 = vmatpush.msra.mxu0 0.0
        %469 = vmatpush.msra.mxu0 0.0
        %470 = vmatpush.msra.mxu0 0.0
        %471 = vmatpush.msra.mxu0 0.0
        %472 = vmatpush.msra.mxu0 0.0
        %473 = vmatpush.msra.mxu0 0.0
        %474 = vmatpush.msra.mxu0 0.0
        %475 = vmatpush.msra.mxu0 0.0
        %476 = vmatpush.msra.mxu0 %v460
        %477 = vmatmul.f32.gmra.mxu0 %v397
        %v478 = vpop.f32.mrf.mxu0
        %v479 = vadd.f32 0.0, %v478
        %480 = vdwg.mxu0
        %v481 = vadd.f32 %v460, %v479
        %483 = vrot.lane.b32.xlu0 %v481, 32
        %v484 = vpop.permute.xlu0 %483
        %vm486 = vcmask 392448
        %487 = vst.msk [vmem:[#allocation2] sm:$0xff] %vm486, %v484
        %s488 = scalar_lea.vmem %s3, 48
        %v489 = vld [vmem:[%s488] sm:$0xff]
        %v490 = vld [vmem:[%s488 + $0x8] sm:$0xff]
        %v491 = vld [vmem:[%s488 + $0x10] sm:$0xff]
        %v492 = vld [vmem:[%s488 + $0x18] sm:$0xff]
        %v493 = vld [vmem:[%s488 + $0x20] sm:$0xff]
        %v494 = vld [vmem:[%s488 + $0x28] sm:$0xff]
        %v495 = vld [vmem:[#allocation2] sm:$0xff]
        %s496 = scalar_lea.vmem %s4, 1
        %v497 = vld [vmem:[%s496] sm:$0x1]
        %v499 = vperm.slane %v497, 0
        %vm501 = vcmask 392192
        %v503 = vsel %vm501, %v495, 0
        %505 = vmatpush.msra.mxu0 0.0
        %506 = vmatpush.msra.mxu0 0.0
        %507 = vmatpush.msra.mxu0 0.0
        %508 = vmatpush.msra.mxu0 0.0
        %509 = vmatpush.msra.mxu0 0.0
        %510 = vmatpush.msra.mxu0 0.0
        %511 = vmatpush.msra.mxu0 0.0
        %512 = vmatpush.msra.mxu0 0.0
        %513 = vmatpush.msra.mxu0 0.0
        %514 = vmatpush.msra.mxu0 0.0
        %515 = vmatpush.msra.mxu0 %v494
        %516 = vmatpush.msra.mxu0 %v493
        %517 = vmatpush.msra.mxu0 %v492
        %518 = vmatpush.msra.mxu0 %v491
        %519 = vmatpush.msra.mxu0 %v490
        %520 = vmatpush.msra.mxu0 %v489
        %521 = vmatmul.f32.gmra.mxu0 %v503
        %v522 = vpop.f32.mrf.mxu0
        %v523 = vadd.f32 %v499, %v522
        %524 = vdwg.mxu0
        %v525 = vmul.f32 %v523, %v457
        %v526 = vmax.f32 %v525, 0.0
        %528 = vrot.lane.b32.xlu0 %v526, 16
        %v529 = vpop.permute.xlu0 %528
        %vm531 = vcmask 130048
        %v532 = vsel %vm531, %v460, %v529
        %v533 = vadd.f32 %v532, %v392
        %534 = vst.msk [vmem:[#allocation3] sm:$0xff] %vm420, %v533
        %s535 = scalar_lea.vmem %s344, 8 [#allocation4]
        %v536 = vld [vmem:[%s535] sm:$0xff]
        %s537 = scalar_lea.vmem %s351, 8 [#allocation5]
        %v538 = vld [vmem:[%s537] sm:$0xff]
        %v540 = vsel %vm395, %v536, 0
        %542 = vmatpush.msra.mxu0 0.0
        %543 = vmatpush.msra.mxu0 0.0
        %544 = vmatpush.msra.mxu0 0.0
        %545 = vmatpush.msra.mxu0 0.0
        %546 = vmatpush.msra.mxu0 0.0
        %547 = vmatpush.msra.mxu0 0.0
        %548 = vmatpush.msra.mxu0 0.0
        %549 = vmatpush.msra.mxu0 0.0
        %550 = vmatpush.msra.mxu0 0.0
        %551 = vmatpush.msra.mxu0 0.0
        %552 = vmatpush.msra.mxu0 0.0
        %553 = vmatpush.msra.mxu0 0.0
        %554 = vmatpush.msra.mxu0 0.0
        %555 = vmatpush.msra.mxu0 0.0
        %556 = vmatpush.msra.mxu0 0.0
        %557 = vmatpush.msra.mxu0 %v392
        %558 = vmatmul.f32.gmra.mxu0 %v540
        %v559 = vpop.f32.mrf.mxu0
        %v560 = vadd.f32 0.0, %v559
        %561 = vdwg.mxu0
        %v562 = vadd.f32 %v392, %v560
        %563 = vst.msk [vmem:[#allocation2] sm:$0xff] %vm420, %v562
        %s564 = scalar_lea.vmem %s3, 96
        %v565 = vld [vmem:[%s564] sm:$0xff]
        %v566 = vld [vmem:[%s564 + $0x8] sm:$0xff]
        %v567 = vld [vmem:[%s564 + $0x10] sm:$0xff]
        %v568 = vld [vmem:[%s564 + $0x18] sm:$0xff]
        %v569 = vld [vmem:[#allocation2] sm:$0xff]
        %s570 = scalar_lea.vmem %s4, 2
        %v571 = vld [vmem:[%s570] sm:$0x1]
        %v573 = vperm.slane %v571, 0
        %v576 = vsel %vm420, %v569, 0
        %578 = vmatpush.msra.mxu0 0.0
        %579 = vmatpush.msra.mxu0 0.0
        %580 = vmatpush.msra.mxu0 0.0
        %581 = vmatpush.msra.mxu0 0.0
        %582 = vmatpush.msra.mxu0 0.0
        %583 = vmatpush.msra.mxu0 0.0
        %584 = vmatpush.msra.mxu0 0.0
        %585 = vmatpush.msra.mxu0 0.0
        %586 = vmatpush.msra.mxu0 0.0
        %587 = vmatpush.msra.mxu0 0.0
        %588 = vmatpush.msra.mxu0 0.0
        %589 = vmatpush.msra.mxu0 0.0
        %590 = vmatpush.msra.mxu0 %v568
        %591 = vmatpush.msra.mxu0 %v567
        %592 = vmatpush.msra.mxu0 %v566
        %593 = vmatpush.msra.mxu0 %v565
        %594 = vmatmul.f32.gmra.mxu0 %v576
        %v595 = vpop.f32.mrf.mxu0
        %v596 = vadd.f32 %v573, %v595
        %597 = vdwg.mxu0
        %599 = vset.pattern.permute.xlu0 0
        %600 = vperm.xlu0 %599, %v538
        %v601 = vpop.permute.xlu0 %600
        %v603 = vmul.f32 %v596, %v601
        %v604 = vmax.f32 %v603, 0.0
        %605 = vmatpush.msra.mxu0 0.0
        %606 = vmatpush.msra.mxu0 0.0
        %607 = vmatpush.msra.mxu0 0.0
        %608 = vmatpush.msra.mxu0 0.0
        %609 = vmatpush.msra.mxu0 0.0
        %610 = vmatpush.msra.mxu0 0.0
        %611 = vmatpush.msra.mxu0 0.0
        %612 = vmatpush.msra.mxu0 0.0
        %613 = vmatpush.msra.mxu0 0.0
        %614 = vmatpush.msra.mxu0 0.0
        %615 = vmatpush.msra.mxu0 0.0
        %616 = vmatpush.msra.mxu0 0.0
        %617 = vmatpush.msra.mxu0 0.0
        %618 = vmatpush.msra.mxu0 0.0
        %619 = vmatpush.msra.mxu0 0.0
        %620 = vmatpush.msra.mxu0 %v604
        %621 = vmatmul.f32.gmra.mxu0 %v540
        %v622 = vpop.f32.mrf.mxu0
        %v623 = vadd.f32 0.0, %v622
        %624 = vdwg.mxu0
        %v625 = vadd.f32 %v604, %v623
        %627 = vrot.lane.b32.xlu0 %v625, 32
        %v628 = vpop.permute.xlu0 %627
        %630 = vst.msk [vmem:[#allocation2] sm:$0xff] %vm486, %v628
        %s631 = scalar_lea.vmem %s3, 144
        %v632 = vld [vmem:[%s631] sm:$0xff]
        %v633 = vld [vmem:[%s631 + $0x8] sm:$0xff]
        %v634 = vld [vmem:[%s631 + $0x10] sm:$0xff]
        %v635 = vld [vmem:[%s631 + $0x18] sm:$0xff]
        %v636 = vld [vmem:[%s631 + $0x20] sm:$0xff]
        %v637 = vld [vmem:[%s631 + $0x28] sm:$0xff]
        %v638 = vld [vmem:[#allocation2] sm:$0xff]
        %s639 = scalar_lea.vmem %s4, 3
        %v640 = vld [vmem:[%s639] sm:$0x1]
        %v642 = vperm.slane %v640, 0
        %v645 = vsel %vm501, %v638, 0
        %647 = vmatpush.msra.mxu0 0.0
        %648 = vmatpush.msra.mxu0 0.0
        %649 = vmatpush.msra.mxu0 0.0
        %650 = vmatpush.msra.mxu0 0.0
        %651 = vmatpush.msra.mxu0 0.0
        %652 = vmatpush.msra.mxu0 0.0
        %653 = vmatpush.msra.mxu0 0.0
        %654 = vmatpush.msra.mxu0 0.0
        %655 = vmatpush.msra.mxu0 0.0
        %656 = vmatpush.msra.mxu0 0.0
        %657 = vmatpush.msra.mxu0 %v637
        %658 = vmatpush.msra.mxu0 %v636
        %659 = vmatpush.msra.mxu0 %v635
        %660 = vmatpush.msra.mxu0 %v634
        %661 = vmatpush.msra.mxu0 %v633
        %662 = vmatpush.msra.mxu0 %v632
        %663 = vmatmul.f32.gmra.mxu0 %v645
        %v664 = vpop.f32.mrf.mxu0
        %v665 = vadd.f32 %v642, %v664
        %666 = vdwg.mxu0
        %v667 = vmul.f32 %v665, %v601
        %v668 = vmax.f32 %v667, 0.0
        %670 = vrot.lane.b32.xlu0 %v668, 16
        %v671 = vpop.permute.xlu0 %670
        %v673 = vsel %vm531, %v604, %v671
        %v674 = vadd.f32 %v673, %v392
        %676 = vrot.lane.b32.xlu0 %v674, 32
        %v677 = vpop.permute.xlu0 %676
        %vm679 = vcmask 523520
        %680 = vst.msk [vmem:[#allocation3] sm:$0xff] %vm679, %v677
        %v681 = vld [vmem:[#allocation3] sm:$0xff]
        %v682 = vld [vmem:[%s5] sm:$0xff]
        %v683 = vld [vmem:[%s5 + $0x8] sm:$0xff]
        %v684 = vld [vmem:[%s5 + $0x10] sm:$0xff]
        %v685 = vld [vmem:[%s5 + $0x18] sm:$0xff]
        %v686 = vld [vmem:[%s5 + $0x20] sm:$0xff]
        %v687 = vld [vmem:[%s5 + $0x28] sm:$0xff]
        %v688 = vld [vmem:[%s5 + $0x30] sm:$0xff]
        %v689 = vld [vmem:[%s5 + $0x38] sm:$0xff]
        %v690 = vld [vmem:[%s6] sm:$0x1]
        %v692 = vperm.slane %v690, 0
        %vm694 = vcmask 523264
        %v696 = vsel %vm694, %v681, 0
        %698 = vmatpush.msra.mxu0 0.0
        %699 = vmatpush.msra.mxu0 0.0
        %700 = vmatpush.msra.mxu0 0.0
        %701 = vmatpush.msra.mxu0 0.0
        %702 = vmatpush.msra.mxu0 0.0
        %703 = vmatpush.msra.mxu0 0.0
        %704 = vmatpush.msra.mxu0 0.0
        %705 = vmatpush.msra.mxu0 0.0
        %706 = vmatpush.msra.mxu0 %v689
        %707 = vmatpush.msra.mxu0 %v688
        %708 = vmatpush.msra.mxu0 %v687
        %709 = vmatpush.msra.mxu0 %v686
        %710 = vmatpush.msra.mxu0 %v685
        %711 = vmatpush.msra.mxu0 %v684
        %712 = vmatpush.msra.mxu0 %v683
        %713 = vmatpush.msra.mxu0 %v682
        %714 = vmatmul.f32.gmra.mxu0 %v696
        %v715 = vpop.f32.mrf.mxu0
        %v716 = vadd.f32 %v692, %v715
        %717 = vdwg.mxu0
        %718 = vst.msk [vmem:[%s387] sm:$0xff] %vm420, %v716
        %s719 = sand.u32 %s191, 1
        %s720 = scalar_lea.sflag [#allocation7], %s719
        %s721 = sand.u32 %s191, 1
        %s722 = smul.addr %s721, 8
        %s723 = scalar_lea.vmem [#allocation6], %s722
        // Predicated region
        $region125: #{tpu_custom_call.1} parent=115 // pred_check
          %p724 = pneg %p201
        $region126: #{tpu_custom_call.1} parent=115 // pred_check_branch
          %726 = sbr.rel (%p724) target = $region128
        $region127: #{tpu_custom_call.1} parent=115 // pred_region
          %728 = vsyncadd %s720, 0
          %s729 = smul.addr %s21, 8
          %s730 = scalar_lea.hbm %s7, %s729
          %s732 = sshll.u32 %s723, 4
          %s733 = int_to_ptr.vmem [resolvable:$true] %s732
          %s734 = sshll.u32 %s730, 4
          %s735 = int_to_ptr.hbm [resolvable:$true] %s734
          %737 = dma.vmem_to_hbm [thread:$0]  %s733, 128, %s735, %s720
        $region128: #{tpu_custom_call.1} parent=115 // pred_fallthru
          _
      $region116: #{tpu_custom_call.1} parent=5 // pred_fallthru
        _
      %p738 = scmp.le.s32.totalorder 2, %s16
      // Predicated region
      $region129: #{tpu_custom_call.1} parent=5 // pred_check
        %p739 = pneg %p738
      $region130: #{tpu_custom_call.1} parent=5 // pred_check_branch
        %741 = sbr.rel (%p739) target = $region132
      $region131: #{tpu_custom_call.1} parent=5 // pred_region
        %s742 = ssub.s32 %s16, 2
        // Predicated region
        $region133: #{tpu_custom_call.1} parent=131 // pred_check
          %p743 = pneg %p207
        $region134: #{tpu_custom_call.1} parent=131 // pred_check_branch
          %745 = sbr.rel (%p743) target = $region136
        $region135: #{tpu_custom_call.1} parent=131 // pred_region
          %s746 = sand.u32 %s192, 1
          %s747 = scalar_lea.sflag [#allocation7], %s746
          %s748 = sand.u32 %s192, 1
          %s749 = smul.addr %s748, 8
          %s750 = scalar_lea.vmem [#allocation6], %s749
          %752 = dma.done %s747, 128
        $region136: #{tpu_custom_call.1} parent=131 // pred_fallthru
          _
      $region132: #{tpu_custom_call.1} parent=5 // pred_fallthru
        _
    $region6: #{tpu_custom_call.1} parent=1 // loop_footer
      %s20 = sadd.s32 1, %s16
    $region7: #{tpu_custom_call.1} parent=1 // loop_footer_branch
      %15 = sbr.rel target = $region3
    $region8: #{tpu_custom_call.1} parent=1 // loop_exit
      _
    %753 = vsyncpa [#allocation7], 1
    %s754 = scalar_lea.sflag [#allocation7], 1
    %755 = vsyncpa %s754, 1

</llo_original>
